<compile_context>
chip_gen: v7x
topology: tpu7x:2x2x1
jax: 0.10.0
libtpu: 0.0.40
codegen_flags: <defaults>
</compile_context>

<pallas_src>
import jax
import jax.numpy as jnp
from jax.experimental import pallas as pl
from jax.experimental.pallas import tpu as pltpu


def _round_up(x, m):
    return (x + m - 1) // m * m


def _make_conv_kernel(tl, pieces):
    """Build the per-tile kernel.

    pieces: tuple of (row_offset, lane_width) describing how to assemble the
    (TL, K) im2col slab from the effective (space-to-depth'd / pre-im2col'd)
    input block.  The slab feeds a single fused MXU contraction; BN scale is
    pre-folded into the weights so the epilogue is bias-add + ReLU only.
    """
    def kernel(x_ref, w_ref, b_ref, o_ref):
        j = pl.program_id(1)
        start = pl.multiple_of(j * tl, 8)
        parts = []
        for off, width in pieces:
            v = x_ref[0, pl.ds(start + off, tl), :]
            if width != v.shape[-1]:
                v = v[:, :width]
            parts.append(v)
        slab = parts[0] if len(parts) == 1 else jnp.concatenate(parts, axis=-1)
        acc = jnp.dot(slab, w_ref[...], preferred_element_type=jnp.float32)
        y = acc + b_ref[...]                       # bias already includes BN shift
        o_ref[0] = jnp.maximum(y, 0.0).astype(o_ref.dtype)
    return kernel


def conv_block_1d(x_nlc, weight, conv_bias, gamma, beta, running_mean, running_var,
                  *, stride, eps=1e-5, block_len=512):
    """One ConvBlock1D: Conv1d(k=3, pad=1, stride) + BatchNorm1d(eval) + ReLU.

    x_nlc:  (B, L, C_in) channels-last (any float dtype; computed in bf16)
    weight: (C_out, C_in, 3)  -- PyTorch Conv1d layout
    returns (B, L_out, C_out) bfloat16
    """
    B, L, C_in = x_nlc.shape
    C_out = weight.shape[0]
    L_out = (L - 1) // stride + 1          # floor((L + 2*1 - 3)/stride) + 1

    # ---- output-length tiling (multiple of 16 for clean bf16 sublane packing) ----
    TL = _round_up(min(block_len, _round_up(L_out, 16)), 16)
    nL = pl.cdiv(L_out, TL)
    L_out_pad = nL * TL

    # ---- fold conv bias + eval-mode BatchNorm ----
    scale = gamma * jax.lax.rsqrt(running_var + eps)                    # (C_out,)
    bias2 = (((conv_bias - running_mean) * scale + beta)
             .astype(jnp.float32).reshape(1, C_out))

    # Fused, tap-major weight with BN scale folded in: (3*C_in, C_out), bf16.
    w_fused = jnp.transpose(weight, (2, 1, 0)).reshape(3 * C_in, C_out)
    w_fused = (w_fused * scale[None, :]).astype(jnp.bfloat16)

    # ---- single padded input array (read once per batch by the kernel) ----
    # Pad so in-kernel reads of the last (possibly partial) tile stay in bounds.
    req = stride * (L_out_pad - 1) + 3
    if stride == 2:
        req = _round_up(req, 2)
    x_pad = jnp.pad(x_nlc, ((0, 0), (1, req - (L + 1)), (0, 0)))

    if stride == 1 and C_in <= 8:
        # Tiny-C_in stem (C_in=1): build the 3*C_in-wide im2col in the wrapper
        # (cheap here) so the kernel is a single dense dot with K=3*C_in.
        taps = [x_pad[:, k:k + L_out_pad, :] for k in range(3)]
        x_eff = jnp.concatenate(taps, axis=-1)                          # (B, Lp, 3*C_in)
        C_eff = _round_up(3 * C_in, 8)
        if C_eff != 3 * C_in:
            x_eff = jnp.pad(x_eff, ((0, 0), (0, 0), (0, C_eff - 3 * C_in)))
            w_fused = jnp.pad(w_fused, ((0, C_eff - 3 * C_in), (0, 0)))
        pieces = ((0, C_eff),)
    elif stride == 1:
        x_eff = x_pad                                                   # (B, req, C_in)
        C_eff = C_in
        pieces = ((0, C_in), (1, C_in), (2, C_in))
    else:  # stride == 2: space-to-depth -> un-strided, lane-aligned tap reads
        x_eff = x_pad.reshape(B, req // 2, 2 * C_in)
        C_eff = 2 * C_in
        pieces = ((0, 2 * C_in), (1, C_in))

    x_eff = x_eff.astype(jnp.bfloat16)
    P = x_eff.shape[1]
    K = w_fused.shape[0]

    kernel = _make_conv_kernel(TL, pieces)

    # TODO(synk): for C_out=64 layers the output last dim is sub-128 (masked
    #             stores); a lane-dense repack would help if stores dominate.
    return pl.pallas_call(
        kernel,
        out_shape=jax.ShapeDtypeStruct((B, L_out, C_out), jnp.bfloat16),
        grid_spec=pltpu.PrefetchScalarGridSpec(
            num_scalar_prefetch=0,
            grid=(B, nL),
            in_specs=[
                # Full padded length per batch; only re-fetched when b changes.
                pl.BlockSpec((1, P, C_eff), lambda b, j: (b, 0, 0)),
                pl.BlockSpec((K, C_out), lambda b, j: (0, 0)),
                pl.BlockSpec((1, C_out), lambda b, j: (0, 0)),
            ],
            out_specs=pl.BlockSpec((1, TL, C_out), lambda b, j: (b, j, 0)),
        ),
        compiler_params=pltpu.CompilerParams(
            dimension_semantics=("parallel", "parallel"),
            vmem_limit_bytes=32 * 1024 * 1024,   # safe on v5e/v6e and v7x (64 MiB phys)
        ),
    )(x_eff, w_fused, bias2)


def encoder1d_pallas(x_ncl, params, *, block_len=512):
    """Full Encoder1D forward (downsamples length by 8). x_ncl: (B, C_in, L)."""
    h = jnp.transpose(x_ncl, (0, 2, 1)).astype(jnp.bfloat16)   # NCL -> NLC, bf16
    for (w, b, g, be, m, v, s) in params:
        h = conv_block_1d(h, w, b, g, be, m, v, stride=s, block_len=block_len)
    return jnp.transpose(h, (0, 2, 1)).astype(jnp.float32)     # NLC -> NCL


# ---------------- pure-JAX reference (for correctness check) ----------------
def _ref_conv_block(x_ncl, weight, bias, gamma, beta, mean, var, stride, eps=1e-5):
    y = jax.lax.conv_general_dilated(
        x_ncl, weight, window_strides=(stride,), padding=((1, 1),),
        dimension_numbers=("NCH", "OIH", "NCH"))
    y = y + bias[None, :, None]
    y = (y - mean[None, :, None]) / jnp.sqrt(var[None, :, None] + eps)
    y = y * gamma[None, :, None] + beta[None, :, None]
    return jnp.maximum(y, 0.0)


def _ref_encoder(x_ncl, params):
    h = x_ncl
    for (w, b, g, be, m, v, s) in params:
        h = _ref_conv_block(h, w, b, g, be, m, v, s)
    return h


if __name__ == "__main__":
    key = jax.random.PRNGKey(0)

    B, C_IN, L = 2, 1, 128
    dims = [64, 64, 128, 128]            # Encoder1D defaults
    strides = [1, 2, 2, 2]

    # Deterministic synthetic parameters for each ConvBlock1D.
    params = []
    cin = C_IN
    for cout, s in zip(dims, strides):
        key, kw, kb, kg, kbt, km, kv = jax.random.split(key, 7)
        w = 0.1 * jax.random.normal(kw, (cout, cin, 3), jnp.float32)     # Conv1d weight
        b = 0.1 * jax.random.normal(kb, (cout,), jnp.float32)            # Conv1d bias
        gamma = 1.0 + 0.1 * jax.random.normal(kg, (cout,), jnp.float32)  # BN weight
        beta = 0.1 * jax.random.normal(kbt, (cout,), jnp.float32)        # BN bias
        mean = 0.1 * jax.random.normal(km, (cout,), jnp.float32)         # BN running_mean
        var = jax.random.uniform(kv, (cout,), jnp.float32, 0.5, 1.5)     # BN running_var
        params.append((w, b, gamma, beta, mean, var, s))
        cin = cout

    key, kx = jax.random.split(key)
    x = jax.random.normal(kx, (B, C_IN, L), jnp.float32)   # NCL, like PyTorch

    # block_len=32 keeps several L-tiles per layer even at this small demo size,
    # exercising the multi-tile pipelined path (real workloads use ~512).
    out = jax.block_until_ready(encoder1d_pallas(x, params, block_len=32))
    ref = jax.block_until_ready(_ref_encoder(x, params))

    assert out.shape == (B, dims[-1], L // 8), out.shape
    max_err = float(jnp.max(jnp.abs(out - ref)))
    # bf16 activations/weights (f32 accumulation) vs. pure-f32 reference.
    assert jnp.allclose(out, ref, atol=1e-1, rtol=1e-1), max_err
    print("KERNEL_OK")
</pallas_src>

<mosaic_0001>
module attributes {stable_mosaic.version = 11 : i64} {
  func.func @kernel(%arg0: i32, %arg1: i32, %arg2: memref<1x128x8xbf16, #tpu.memory_space<vmem>>, %arg3: memref<8x64xbf16, #tpu.memory_space<vmem>>, %arg4: memref<1x64xf32, #tpu.memory_space<vmem>>, %arg5: memref<1x32x64xbf16, #tpu.memory_space<vmem>>) attributes {dimension_semantics = [#tpu.dimension_semantics<parallel>, #tpu.dimension_semantics<parallel>], iteration_bounds = array<i64: 2, 4>, scalar_prefetch = 0 : i64, scratch_operands = 0 : i64, tpu.core_type = #tpu.core_type<tc>, window_params = [{transform_indices = @transform_0, window_bounds = array<i64: 1, 128, 8>}, {pipeline_mode = #tpu.pipeline_mode<synchronous>, transform_indices = @transform_1, window_bounds = array<i64: 8, 64>}, {pipeline_mode = #tpu.pipeline_mode<synchronous>, transform_indices = @transform_2, window_bounds = array<i64: 1, 64>}, {transform_indices = @transform_3, window_bounds = array<i64: 1, 32, 64>}]} {
    %c32_i32 = arith.constant 32 : i32
    %0 = arith.muli %arg1, %c32_i32 : i32
    %1 = tpu.assume_multiple %0, 8 : i32
    %c0_i32 = arith.constant 0 : i32
    %2 = arith.addi %1, %c0_i32 : i32
    %c0 = arith.constant 0 : index
    %3 = arith.index_cast %2 : i32 to index
    %c0_0 = arith.constant 0 : index
    %4 = vector.load %arg2[%c0, %3, %c0_0] : memref<1x128x8xbf16, #tpu.memory_space<vmem>>, vector<1x32x8xbf16>
    %5 = vector.shape_cast %4 : vector<1x32x8xbf16> to vector<32x8xbf16>
    %c0_1 = arith.constant 0 : index
    %c0_2 = arith.constant 0 : index
    %6 = vector.load %arg3[%c0_1, %c0_2] : memref<8x64xbf16, #tpu.memory_space<vmem>>, vector<8x64xbf16>
    %cst = arith.constant dense<0.000000e+00> : vector<32x64xf32>
    %7 = tpu.matmul %5, %6, %cst {dimension_numbers = #tpu.dot_dimension_numbers<[1], [0], [0], [1], [0, 0, 1, 1], [], []>} : vector<32x8xbf16>, vector<8x64xbf16>, vector<32x64xf32> -> vector<32x64xf32>
    %c0_3 = arith.constant 0 : index
    %c0_4 = arith.constant 0 : index
    %8 = vector.load %arg4[%c0_3, %c0_4] : memref<1x64xf32, #tpu.memory_space<vmem>>, vector<1x64xf32>
    %9 = vector.broadcast %8 : vector<1x64xf32> to vector<32x64xf32>
    %10 = arith.addf %7, %9 : vector<32x64xf32>
    %cst_5 = arith.constant 0.000000e+00 : f32
    %11 = vector.broadcast %cst_5 : f32 to vector<32x64xf32>
    %12 = arith.maximumf %10, %11 : vector<32x64xf32>
    %13 = arith.truncf %12 : vector<32x64xf32> to vector<32x64xbf16>
    %c0_6 = arith.constant 0 : index
    %c0_7 = arith.constant 0 : index
    %c0_8 = arith.constant 0 : index
    %14 = vector.load %arg5[%c0_6, %c0_7, %c0_8] : memref<1x32x64xbf16, #tpu.memory_space<vmem>>, vector<1x32x64xbf16>
    %15 = vector.shape_cast %14 : vector<1x32x64xbf16> to vector<32x64xbf16>
    %16 = vector.shape_cast %13 : vector<32x64xbf16> to vector<1x32x64xbf16>
    tpu.vector_store %arg5[%c0_6, %c0_7, %c0_8], %16 {strides = array<i32>} : memref<1x32x64xbf16, #tpu.memory_space<vmem>>, vector<1x32x64xbf16>,
    return
  }
  func.func @transform_0(%arg0: i32, %arg1: i32) -> (i32, i32, i32) {
    %c0_i32 = arith.constant 0 : i32
    %c0_i32_0 = arith.constant 0 : i32
    %c0_i32_1 = arith.constant 0 : i32
    return %arg0, %c0_i32, %c0_i32_0 : i32, i32, i32
  }
  func.func @transform_1(%arg0: i32, %arg1: i32) -> (i32, i32) {
    %c0_i32 = arith.constant 0 : i32
    %c0_i32_0 = arith.constant 0 : i32
    %c0_i32_1 = arith.constant 0 : i32
    return %c0_i32, %c0_i32_0 : i32, i32
  }
  func.func @transform_2(%arg0: i32, %arg1: i32) -> (i32, i32) {
    %c0_i32 = arith.constant 0 : i32
    %c0_i32_0 = arith.constant 0 : i32
    %c0_i32_1 = arith.constant 0 : i32
    return %c0_i32, %c0_i32_0 : i32, i32
  }
  func.func @transform_3(%arg0: i32, %arg1: i32) -> (i32, i32, i32) {
    %c0_i32 = arith.constant 0 : i32
    %c0_i32_0 = arith.constant 0 : i32
    return %arg0, %arg1, %c0_i32 : i32, i32, i32
  }
}

</mosaic_0001>

<llo_original>
// kernel: tpu_custom_call.1
$region0: #{tpu_custom_call.1}
  #allocation0 [shape = 'u32[]', space=smem, size = 0x4, offset = 0x4, fixed_abs, tag = 'smem constant byte address 0x4 - core index']
  #allocation1 [shape = 'u32[144,128]{1,0:T(1,128)}', space=vmem, size = 0x12000, scoped, tag = 'internal scratch']
  %s0 = inlined_call_operand.vmem [shape: bf16[2,128,8], index: 0, kind: input, shape index: {}]
  %s1 = inlined_call_operand.vmem [shape: bf16[8,64], index: 1, kind: input, shape index: {}]
  %s2 = inlined_call_operand.vmem [shape: f32[1,64], index: 2, kind: input, shape index: {}]
  %s3 = inlined_call_operand.vmem [shape: bf16[2,128,64], index: 3, kind: output, shape index: {}]
  %s4 = sld [smem:[#allocation0]]
  $region45: #{tpu_custom_call.1} parent=0
    _
  %s6 = ssub.s32 1, %s4
  %s7 = scalar_select 0, %s6, %s4
  loop: start=0, step=1, limit=10
  $region2: #{tpu_custom_call.1} parent=0 // loop_pre_header
    _
  $region3: #{tpu_custom_call.1} parent=0 // loop_header
    %s9 = sphi 0, %s13
    %p10 = scmp.ge.s32.totalorder %s9, 10
    %s16 = sphi 0, %s28
    %s17 = sphi 0, %s24
    %s18 = sphi 0, %s16
    %s19 = sphi 0, %s17
    %s20 = sphi 0, %s18
    %s21 = sphi 0, %s19
    %s31 = sphi 0, %s33
    %s34 = sphi 0, %s31
    %s35 = sphi 0, %s34
    %s51 = sphi 0, %s35
    %s55 = sphi 0, %s55
    %s57 = sphi 0, %s55
    %s58 = sphi 0, %s57
    %s72 = sphi 0, %s58
    %s76 = sphi 0, %s76
    %s78 = sphi 0, %s76
    %s79 = sphi 0, %s78
    %s93 = sphi 0, %s79
    %s101 = sphi 0, %s103
    %s104 = sphi 0, %s101
    %s105 = sphi 0, %s104
    %s121 = sphi 0, %s105
  $region4: #{tpu_custom_call.1} parent=0 // loop_header_branch
    %12 = sbr.rel (%p10) target = $region8
  $region5: #{tpu_custom_call.1} parent=0 // loop_body
    %s14 = ssub.s32 %s9, 1
    %s15 = ssub.s32 %s9, 2
    %s22 = sadd.s32 1, %s17
    %p23 = scmp.ge.s32.totalorder %s22, 4
    %s24 = scalar_select %p23, 0, %s22
    %s25 = sadd.s32 1, %s16
    %s26 = scalar_select %p23, %s25, %s16
    %p27 = scmp.ge.s32.totalorder %s26, 2
    %s28 = scalar_select %p27, 0, %s26
    %s29 = ssub.s32 %s16, %s28
    %p30 = scmp.eq.s32.totalorder %s29, 0
    %s32 = sadd.s32 %s31, 1
    %s33 = scalar_select %p30, %s31, %s32
    %p36 = pneg %p30
    %p37 = scmp.eq.s32.totalorder %s9, 7
    %p38 = por %p36, %p37
    %p39 = scmp.ne.s32.totalorder %s31, %s34
    %p40 = scmp.eq.s32.totalorder %s9, 0
    %p41 = por %p39, %p40
    %p42 = scmp.ne.s32.totalorder %s31, %s34
    %p43 = scmp.eq.s32.totalorder %s14, 7
    %p44 = por %p42, %p43
    %p45 = scmp.ne.s32.totalorder %s34, %s35
    %p46 = scmp.eq.s32.totalorder %s14, 0
    %p47 = por %p45, %p46
    %p48 = scmp.ne.s32.totalorder %s34, %s35
    %p49 = scmp.eq.s32.totalorder %s15, 7
    %p50 = por %p48, %p49
    %p52 = scmp.ne.s32.totalorder %s35, %s51
    %p53 = scmp.eq.s32.totalorder %s15, 0
    %p54 = por %p52, %p53
    %s56 = sadd.s32 %s55, 1
    %p59 = scmp.eq.s32.totalorder %s9, 7
    %p60 = scmp.ne.s32.totalorder %s55, %s57
    %p61 = scmp.eq.s32.totalorder %s9, 0
    %p62 = por %p60, %p61
    %p63 = scmp.ne.s32.totalorder %s55, %s57
    %p64 = scmp.eq.s32.totalorder %s14, 7
    %p65 = por %p63, %p64
    %p66 = scmp.ne.s32.totalorder %s57, %s58
    %p67 = scmp.eq.s32.totalorder %s14, 0
    %p68 = por %p66, %p67
    %p69 = scmp.ne.s32.totalorder %s57, %s58
    %p70 = scmp.eq.s32.totalorder %s15, 7
    %p71 = por %p69, %p70
    %p73 = scmp.ne.s32.totalorder %s58, %s72
    %p74 = scmp.eq.s32.totalorder %s15, 0
    %p75 = por %p73, %p74
    %s77 = sadd.s32 %s76, 1
    %p80 = scmp.eq.s32.totalorder %s9, 7
    %p81 = scmp.ne.s32.totalorder %s76, %s78
    %p82 = scmp.eq.s32.totalorder %s9, 0
    %p83 = por %p81, %p82
    %p84 = scmp.ne.s32.totalorder %s76, %s78
    %p85 = scmp.eq.s32.totalorder %s14, 7
    %p86 = por %p84, %p85
    %p87 = scmp.ne.s32.totalorder %s78, %s79
    %p88 = scmp.eq.s32.totalorder %s14, 0
    %p89 = por %p87, %p88
    %p90 = scmp.ne.s32.totalorder %s78, %s79
    %p91 = scmp.eq.s32.totalorder %s15, 7
    %p92 = por %p90, %p91
    %p94 = scmp.ne.s32.totalorder %s79, %s93
    %p95 = scmp.eq.s32.totalorder %s15, 0
    %p96 = por %p94, %p95
    %s97 = ssub.s32 %s16, %s28
    %s98 = ssub.s32 %s17, %s24
    %s99 = sor.u32 %s97, %s98
    %p100 = scmp.eq.s32.totalorder %s99, 0
    %s102 = sadd.s32 %s101, 1
    %s103 = scalar_select %p100, %s101, %s102
    %p106 = pneg %p100
    %p107 = scmp.eq.s32.totalorder %s9, 7
    %p108 = por %p106, %p107
    %p109 = scmp.ne.s32.totalorder %s101, %s104
    %p110 = scmp.eq.s32.totalorder %s9, 0
    %p111 = por %p109, %p110
    %p112 = scmp.ne.s32.totalorder %s101, %s104
    %p113 = scmp.eq.s32.totalorder %s14, 7
    %p114 = por %p112, %p113
    %p115 = scmp.ne.s32.totalorder %s104, %s105
    %p116 = scmp.eq.s32.totalorder %s14, 0
    %p117 = por %p115, %p116
    %p118 = scmp.ne.s32.totalorder %s104, %s105
    %p119 = scmp.eq.s32.totalorder %s15, 7
    %p120 = por %p118, %p119
    %p122 = scmp.ne.s32.totalorder %s105, %s121
    %p123 = scmp.eq.s32.totalorder %s15, 0
    %p124 = por %p122, %p123
    %p125 = scmp.le.s32.totalorder 1, %s9
    %p126 = scmp.lt.s32.totalorder %s9, 9
    %p127 = pnand %p125, %p126
    %p128 = pneg %p127
    // Predicated region
    $region9: #{tpu_custom_call.1} parent=5 // pred_check
      _
    $region10: #{tpu_custom_call.1} parent=5 // pred_check_branch
      %130 = sbr.rel (%p127) target = $region12
    $region11: #{tpu_custom_call.1} parent=5 // pred_region
      %s131 = ssub.s32 %s9, 1
      // Predicated region
      $region13: #{tpu_custom_call.1} parent=11 // pred_check
        %p132 = pneg %p68
      $region14: #{tpu_custom_call.1} parent=11 // pred_check_branch
        %134 = sbr.rel (%p132) target = $region16
      $region15: #{tpu_custom_call.1} parent=11 // pred_region
        _
      $region16: #{tpu_custom_call.1} parent=11 // pred_fallthru
        _
      // Predicated region
      $region17: #{tpu_custom_call.1} parent=11 // pred_check
        %p135 = pneg %p89
      $region18: #{tpu_custom_call.1} parent=11 // pred_check_branch
        %137 = sbr.rel (%p135) target = $region20
      $region19: #{tpu_custom_call.1} parent=11 // pred_region
        _
      $region20: #{tpu_custom_call.1} parent=11 // pred_fallthru
        _
    $region12: #{tpu_custom_call.1} parent=5 // pred_fallthru
      _
    %p138 = scmp.lt.s32.totalorder %s9, 8
    // Predicated region
    $region21: #{tpu_custom_call.1} parent=5 // pred_check
      %p139 = pneg %p138
    $region22: #{tpu_custom_call.1} parent=5 // pred_check_branch
      %141 = sbr.rel (%p139) target = $region24
    $region23: #{tpu_custom_call.1} parent=5 // pred_region
      // Predicated region
      $region25: #{tpu_custom_call.1} parent=23 // pred_check
        %p142 = pneg %p41
      $region26: #{tpu_custom_call.1} parent=23 // pred_check_branch
        %144 = sbr.rel (%p142) target = $region28
      $region27: #{tpu_custom_call.1} parent=23 // pred_region
        %p145 = scmp.lt.s32.totalorder %s16, 1
        %s146 = scalar_select %p145, %s16, 1
        %s147 = smul.addr %s146, 16
        %s148 = smul.addr %s147, 4
        %s149 = scalar_lea.vmem %s0, %s148
      $region28: #{tpu_custom_call.1} parent=23 // pred_fallthru
        _
    $region24: #{tpu_custom_call.1} parent=5 // pred_fallthru
      _
    %p150 = scmp.le.s32.totalorder 1, %s9
    %p151 = scmp.lt.s32.totalorder %s9, 9
    %p152 = pnand %p150, %p151
    %p153 = pneg %p152
    // Predicated region
    $region29: #{tpu_custom_call.1} parent=5 // pred_check
      _
    $region30: #{tpu_custom_call.1} parent=5 // pred_check_branch
      %155 = sbr.rel (%p152) target = $region32
    $region31: #{tpu_custom_call.1} parent=5 // pred_region
      %s156 = ssub.s32 %s9, 1
      %p157 = scmp.lt.s32.totalorder %s18, 1
      %s158 = scalar_select %p157, %s18, 1
      %s159 = smul.addr %s158, 16
      %s160 = smul.addr %s159, 4
      %s161 = scalar_lea.vmem %s0, %s160
      %p162 = pneg %p47
      %p163 = pneg %p44
      %p164 = pneg %p68
      %p165 = pneg %p65
      %p166 = pneg %p89
      %p167 = pneg %p86
      %p168 = pneg %p117
      %p169 = pneg %p114
      %s170 = smul.u32 4, %s19
      %p171 = scmp.lt.s32.totalorder %s18, 1
      %s172 = scalar_select %p171, %s18, 1
      %p173 = scmp.lt.s32.totalorder %s170, 15
      %s174 = scalar_select %p173, %s170, 15
      %s175 = smul.addr %s172, 16
      %s176 = sadd.s32 %s174, %s175
      %s177 = smul.addr %s176, 4
      %s178 = scalar_lea.vmem %s3, %s177
      %p179 = scmp.lt.s32.totalorder %s18, 1
      %s180 = scalar_select %p179, %s18, 1
      %s181 = smul.addr %s180, 16
      %s182 = smul.addr %s181, 4
      %s183 = scalar_lea.vmem %s0, %s182
      %s184 = smul.u32 4, %s19
      %p185 = scmp.lt.s32.totalorder %s18, 1
      %s186 = scalar_select %p185, %s18, 1
      %p187 = scmp.lt.s32.totalorder %s184, 15
      %s188 = scalar_select %p187, %s184, 15
      %s189 = smul.addr %s186, 16
      %s190 = sadd.s32 %s188, %s189
      %s191 = smul.addr %s190, 4
      %s192 = scalar_lea.vmem %s3, %s191
      %s193 = smul.u32 4, %s19
      %s195 = smul.u32 %s19, 32
      %s196 = sshra.s32 %s195, 3
      %s197 = sand.u32 %s195, 7
      %s198 = smul.addr %s196, 4
      %s199 = scalar_lea.vmem %s183, %s198
      %v200 = vld [vmem:[%s199] sm:$0xf]
      %v201 = vld [vmem:[%s199 + $0x4] sm:$0xf]
      %v202 = vld [vmem:[%s199 + $0x8] sm:$0xf]
      %v203 = vld [vmem:[%s199 + $0xc] sm:$0xf]
      %v204 = vld [vmem:[%s1] sm:$0xf]
      %v205 = vld [vmem:[%s2] sm:$0x1]
      %v207 = vlaneseq
      %v208 = vshrl.u32 %v207, 7
      %v209 = vsub.s32 0, %v208
      %v210 = vrot.slane %v205, %v209
      %v216 = vunpack.c.l.b16 %v200
      %v217 = vunpack.c.l.b16 %v201
      %v218 = vunpack.c.l.b16 %v202
      %v219 = vunpack.c.l.b16 %v203
      %v220 = vpack.c.b16 %v217, %v216
      %v221 = vpack.c.b16 %v219, %v218
      %vm222 = vcmask 64512
      %v224 = vsel %vm222, %v220, 0
      %v227 = vsel %vm222, %v221, 0
      %vm229 = vcmask 1043456
      %v231 = vsel %vm229, %v204, 0
      %233 = vmatprep.subr.bf16.mxu0 0
      %234 = vmatpush1.bf16.msra.mxu0 %v231
      %235 = vmatprep.subr.bf16.mxu0 0
      %236 = vmatpush1.bf16.msra.mxu0 0
      %237 = vmatprep.subr.bf16.mxu0 0
      %238 = vmatpush1.bf16.msra.mxu0 0
      %239 = vmatprep.subr.bf16.mxu0 0
      %240 = vmatpush1.bf16.msra.mxu0 0
      %241 = vmatprep.subr.bf16.mxu0 0
      %242 = vmatpush1.bf16.msra.mxu0 0
      %243 = vmatprep.subr.bf16.mxu0 0
      %244 = vmatpush1.bf16.msra.mxu0 0
      %245 = vmatprep.subr.bf16.mxu0 0
      %246 = vmatpush1.bf16.msra.mxu0 0
      %247 = vmatprep.subr.bf16.mxu0 0
      %248 = vmatpush1.bf16.msra.mxu0 0
      %249 = vmatprep.subr.bf16.mxu0 0
      %250 = vmatpush1.bf16.msra.mxu0 0
      %251 = vmatprep.subr.bf16.mxu0 0
      %252 = vmatpush1.bf16.msra.mxu0 0
      %253 = vmatprep.subr.bf16.mxu0 0
      %254 = vmatpush1.bf16.msra.mxu0 0
      %255 = vmatprep.subr.bf16.mxu0 0
      %256 = vmatpush1.bf16.msra.mxu0 0
      %257 = vmatprep.subr.bf16.mxu0 0
      %258 = vmatpush1.bf16.msra.mxu0 0
      %259 = vmatprep.subr.bf16.mxu0 0
      %260 = vmatpush1.bf16.msra.mxu0 0
      %261 = vmatprep.subr.bf16.mxu0 0
      %262 = vmatpush1.bf16.msra.mxu0 0
      %263 = vmatprep.subr.bf16.mxu0 0
      %264 = vmatpush1.bf16.msra.mxu0 0
      %265 = vmatprep.mubr.bf16.mxu0 0
      %266 = vmatmul.mubr.bf16.gmra.mrb[0].mxu0 %v224
      %v267 = vpop.f32.mrb[0].mxu0
      %v268 = vadd.f32 %v210, %v267
      %v269 = vpop.f32.mrb[0].mxu0
      %v270 = vpop.f32.mrb[0].mxu0
      %v271 = vadd.f32 %v210, %v270
      %v272 = vpop.f32.mrb[0].mxu0
      %273 = vmatprep.mubr.bf16.mxu0 0
      %274 = vmatmul.mubr.bf16.gmra.mrb[0].mxu0 %v227
      %v275 = vpop.f32.mrb[0].mxu0
      %v276 = vadd.f32 %v210, %v275
      %v277 = vpop.f32.mrb[0].mxu0
      %v278 = vpop.f32.mrb[0].mxu0
      %v279 = vadd.f32 %v210, %v278
      %v280 = vpop.f32.mrb[0].mxu0
      %281 = vdwg.mxu0
      %v282 = vmax.f32 %v268, 0.0
      %v283 = vmax.f32 %v271, 0.0
      %v284 = vmax.f32 %v276, 0.0
      %v285 = vmax.f32 %v279, 0.0
      %v286 = vpack.c.bf16 %v283, %v282
      %v287 = vpack.c.bf16 %v285, %v284
      %v290 = vunpack.c.l.b16 %v286
      %v291 = vunpack.c.h.b16 %v286
      %v292 = vunpack.c.l.b16 %v287
      %v293 = vunpack.c.h.b16 %v287
      %v294 = vpack.c.b16 %v290, %v290
      %v295 = vpack.c.b16 %v291, %v291
      %v296 = vpack.c.b16 %v292, %v292
      %v297 = vpack.c.b16 %v293, %v293
      %vm302 = vcmask 519168
      %303 = vst.msk [vmem:[%s192] sm:$0xf] %vm302, %v294
      %304 = vst.msk [vmem:[%s192 + $0x4] sm:$0xf] %vm302, %v295
      %305 = vst.msk [vmem:[%s192 + $0x8] sm:$0xf] %vm302, %v296
      %306 = vst.msk [vmem:[%s192 + $0xc] sm:$0xf] %vm302, %v297
      %s307 = smul.u32 4, %s19
      %p308 = scmp.lt.s32.totalorder %s18, 1
      %s309 = scalar_select %p308, %s18, 1
      %p310 = scmp.lt.s32.totalorder %s307, 15
      %s311 = scalar_select %p310, %s307, 15
      %s312 = smul.addr %s309, 16
      %s313 = sadd.s32 %s311, %s312
      %s314 = smul.addr %s313, 4
      %s315 = scalar_lea.vmem %s3, %s314
      // Predicated region
      $region33: #{tpu_custom_call.1} parent=31 // pred_check
        %p316 = pneg %p114
      $region34: #{tpu_custom_call.1} parent=31 // pred_check_branch
        %318 = sbr.rel (%p316) target = $region36
      $region35: #{tpu_custom_call.1} parent=31 // pred_region
        %s319 = smul.u32 4, %s19
      $region36: #{tpu_custom_call.1} parent=31 // pred_fallthru
        _
    $region32: #{tpu_custom_call.1} parent=5 // pred_fallthru
      _
    %p320 = scmp.le.s32.totalorder 2, %s9
    // Predicated region
    $region37: #{tpu_custom_call.1} parent=5 // pred_check
      %p321 = pneg %p320
    $region38: #{tpu_custom_call.1} parent=5 // pred_check_branch
      %323 = sbr.rel (%p321) target = $region40
    $region39: #{tpu_custom_call.1} parent=5 // pred_region
      %s324 = ssub.s32 %s9, 2
      // Predicated region
      $region41: #{tpu_custom_call.1} parent=39 // pred_check
        %p325 = pneg %p120
      $region42: #{tpu_custom_call.1} parent=39 // pred_check_branch
        %327 = sbr.rel (%p325) target = $region44
      $region43: #{tpu_custom_call.1} parent=39 // pred_region
        %s328 = smul.u32 4, %s21
        %p329 = scmp.lt.s32.totalorder %s20, 1
        %s330 = scalar_select %p329, %s20, 1
        %p331 = scmp.lt.s32.totalorder %s328, 15
        %s332 = scalar_select %p331, %s328, 15
        %s333 = smul.addr %s330, 16
        %s334 = sadd.s32 %s332, %s333
        %s335 = smul.addr %s334, 4
        %s336 = scalar_lea.vmem %s3, %s335
      $region44: #{tpu_custom_call.1} parent=39 // pred_fallthru
        _
    $region40: #{tpu_custom_call.1} parent=5 // pred_fallthru
      _
  $region6: #{tpu_custom_call.1} parent=0 // loop_footer
    %s13 = sadd.s32 1, %s9
  $region7: #{tpu_custom_call.1} parent=0 // loop_footer_branch
    %8 = sbr.rel target = $region3
  $region8: #{tpu_custom_call.1} parent=0 // loop_exit
    _

</llo_original>
